<compile_context>
chip_gen: v6e
topology: v6e:2x2x1
jax: 0.10.0
libtpu: 0.0.40
codegen_flags: <defaults>
</compile_context>

<pallas_src>
import functools

import jax
import jax.numpy as jnp
from jax.experimental import pallas as pl
from jax.experimental.pallas import tpu as pltpu


# Packed scalar layout inside the single SMEM buffer (26 f32 total):
#   [ 0:12)  w1 (3,4) row-major   -> w1[k, j] at  0 + k*4 + j
#   [12:16)  b1 (4,)              -> b1[j]    at 12 + j
#   [16:24)  w2 (4,2) row-major   -> w2[j, m] at 16 + j*2 + m
#   [24:26)  b2 (2,)              -> b2[m]    at 24 + m
_W1_OFF, _B1_OFF, _W2_OFF, _B2_OFF, _NPARAMS = 0, 12, 16, 24, 26


def mlp_kernel(w_ref, x_ref, o_ref):
    """One feature-major tile: x_ref (3, T) -> o_ref (2, T).

    Weights are SMEM scalars; both layers are unrolled VPU FMAs (no MXU).
    """
    x = x_ref[...]                                    # (3, T) f32, lane-dense
    x_rows = [x[k:k + 1, :] for k in range(3)]        # each (1, T)

    # Layer 1: h_j = tanh(sum_k w1[k, j] * x_k + b1[j]),  j = 0..3
    h_rows = []
    for j in range(4):
        acc = w_ref[_B1_OFF + j] + w_ref[_W1_OFF + 0 * 4 + j] * x_rows[0]
        acc = acc + w_ref[_W1_OFF + 1 * 4 + j] * x_rows[1]
        acc = acc + w_ref[_W1_OFF + 2 * 4 + j] * x_rows[2]
        h_rows.append(jnp.tanh(acc))                  # EUP (separate slot)

    # Layer 2: out_m = sum_j w2[j, m] * h_j + b2[m],  m = 0..1
    for m in range(2):
        acc = w_ref[_B2_OFF + m] + w_ref[_W2_OFF + 0 * 2 + m] * h_rows[0]
        acc = acc + w_ref[_W2_OFF + 1 * 2 + m] * h_rows[1]
        acc = acc + w_ref[_W2_OFF + 2 * 2 + m] * h_rows[2]
        acc = acc + w_ref[_W2_OFF + 3 * 2 + m] * h_rows[3]
        o_ref[m:m + 1, :] = acc


@functools.partial(jax.jit, static_argnames=("tile_n",))
def model3_1_forward(x, w1, b1, w2, b2, *, tile_n=1024):
    """x: (N, 3) f32; w1: (3, 4); b1: (4,); w2: (4, 2); b2: (2,).

    Returns (N, 2) f32 = tanh(x @ w1 + b1) @ w2 + b2.
    """
    N = x.shape[0]

    # Lane-aligned tile: multiple of 128, capped at `tile_n` (sized so
    # double-buffered tiles fit comfortably in v7x's 64 MiB VMEM as well).
    n_pad128 = ((N + 127) // 128) * 128
    tile = min(tile_n, n_pad128)
    n_pad = ((N + tile - 1) // tile) * tile

    # Feature-major, zero-padded input slab: (3, n_pad).
    x_t = jnp.zeros((3, n_pad), jnp.float32).at[:, :N].set(x.astype(jnp.float32).T)

    # Pack all 26 weight/bias scalars into one SMEM buffer.
    w_packed = jnp.concatenate([
        w1.reshape(-1), b1.reshape(-1), w2.reshape(-1), b2.reshape(-1)
    ]).astype(jnp.float32)

    out_t = pl.pallas_call(
        mlp_kernel,
        out_shape=jax.ShapeDtypeStruct((2, n_pad), jnp.float32),
        grid=(n_pad // tile,),
        in_specs=[
            pl.BlockSpec(memory_space=pltpu.MemorySpace.SMEM),   # packed weights
            pl.BlockSpec((3, tile), lambda i: (0, i)),           # x tile (lane-dense)
        ],
        out_specs=pl.BlockSpec((2, tile), lambda i: (0, i)),     # out tile (lane-dense)
        compiler_params=pltpu.CompilerParams(
            dimension_semantics=("parallel",)),
        cost_estimate=pl.CostEstimate(
            flops=40 * n_pad,
            transcendentals=4 * n_pad,
            bytes_accessed=20 * n_pad),
    )(w_packed, x_t)

    return out_t[:, :N].T                                        # (N, 2)


def init_params():
    # Deterministic init mimicking PyTorch nn.Linear default:
    # uniform(-1/sqrt(fan_in), 1/sqrt(fan_in)).
    key = jax.random.PRNGKey(0)
    k1, k2, k3, k4 = jax.random.split(key, 4)
    bound1 = 1.0 / jnp.sqrt(3.0)
    bound2 = 1.0 / jnp.sqrt(4.0)
    w1 = jax.random.uniform(k1, (3, 4), jnp.float32, -bound1, bound1)
    b1 = jax.random.uniform(k2, (4,), jnp.float32, -bound1, bound1)
    w2 = jax.random.uniform(k3, (4, 2), jnp.float32, -bound2, bound2)
    b2 = jax.random.uniform(k4, (2,), jnp.float32, -bound2, bound2)
    return w1, b1, w2, b2


if __name__ == "__main__":
    key = jax.random.PRNGKey(0)
    x = jax.random.normal(jax.random.fold_in(key, 1), (8, 3), jnp.float32)
    w1, b1, w2, b2 = init_params()

    out = jax.block_until_ready(model3_1_forward(x, w1, b1, w2, b2))

    # Pure-JAX reference check of the same forward pass.
    ref = jnp.tanh(x @ w1 + b1) @ w2 + b2
    assert out.shape == (8, 2)
    assert jnp.allclose(out, ref, atol=1e-5, rtol=1e-5), float(
        jnp.max(jnp.abs(out - ref)))
    print("KERNEL_OK")
</pallas_src>

<mosaic_0001>
module attributes {stable_mosaic.version = 11 : i64} {
  func.func @mlp_kernel(%arg0: i32, %arg1: memref<26xf32, #tpu.memory_space<smem>>, %arg2: memref<3x128xf32, #tpu.memory_space<vmem>>, %arg3: memref<2x128xf32, #tpu.memory_space<vmem>>) attributes {dimension_semantics = [#tpu.dimension_semantics<parallel>], iteration_bounds = array<i64: 1>, scalar_prefetch = 0 : i64, scratch_operands = 0 : i64, tpu.core_type = #tpu.core_type<tc>, window_params = [{transform_indices = @transform_0, window_bounds = array<i64: 26>}, {transform_indices = @transform_1, window_bounds = array<i64: 3, 128>}, {transform_indices = @transform_2, window_bounds = array<i64: 2, 128>}]} {
    %c0 = arith.constant 0 : index
    %c0_0 = arith.constant 0 : index
    %0 = vector.load %arg2[%c0, %c0_0] : memref<3x128xf32, #tpu.memory_space<vmem>>, vector<3x128xf32>
    %1 = vector.extract_strided_slice %0 {offsets = [0, 0], sizes = [1, 128], strides = [1, 1]} : vector<3x128xf32> to vector<1x128xf32>
    %2 = vector.extract_strided_slice %0 {offsets = [1, 0], sizes = [1, 128], strides = [1, 1]} : vector<3x128xf32> to vector<1x128xf32>
    %3 = vector.extract_strided_slice %0 {offsets = [2, 0], sizes = [1, 128], strides = [1, 1]} : vector<3x128xf32> to vector<1x128xf32>
    %c12 = arith.constant 12 : index
    %4 = memref.load %arg1[%c12] : memref<26xf32, #tpu.memory_space<smem>>
    %c0_1 = arith.constant 0 : index
    %5 = memref.load %arg1[%c0_1] : memref<26xf32, #tpu.memory_space<smem>>
    %6 = vector.broadcast %5 : f32 to vector<1x128xf32>
    %7 = arith.mulf %6, %1 : vector<1x128xf32>
    %8 = vector.broadcast %4 : f32 to vector<1x128xf32>
    %9 = arith.addf %8, %7 : vector<1x128xf32>
    %c4 = arith.constant 4 : index
    %10 = memref.load %arg1[%c4] : memref<26xf32, #tpu.memory_space<smem>>
    %11 = vector.broadcast %10 : f32 to vector<1x128xf32>
    %12 = arith.mulf %11, %2 : vector<1x128xf32>
    %13 = arith.addf %9, %12 : vector<1x128xf32>
    %c8 = arith.constant 8 : index
    %14 = memref.load %arg1[%c8] : memref<26xf32, #tpu.memory_space<smem>>
    %15 = vector.broadcast %14 : f32 to vector<1x128xf32>
    %16 = arith.mulf %15, %3 : vector<1x128xf32>
    %17 = arith.addf %13, %16 : vector<1x128xf32>
    %18 = math.tanh %17 : vector<1x128xf32>
    %c13 = arith.constant 13 : index
    %19 = memref.load %arg1[%c13] : memref<26xf32, #tpu.memory_space<smem>>
    %c1 = arith.constant 1 : index
    %20 = memref.load %arg1[%c1] : memref<26xf32, #tpu.memory_space<smem>>
    %21 = vector.broadcast %20 : f32 to vector<1x128xf32>
    %22 = arith.mulf %21, %1 : vector<1x128xf32>
    %23 = vector.broadcast %19 : f32 to vector<1x128xf32>
    %24 = arith.addf %23, %22 : vector<1x128xf32>
    %c5 = arith.constant 5 : index
    %25 = memref.load %arg1[%c5] : memref<26xf32, #tpu.memory_space<smem>>
    %26 = vector.broadcast %25 : f32 to vector<1x128xf32>
    %27 = arith.mulf %26, %2 : vector<1x128xf32>
    %28 = arith.addf %24, %27 : vector<1x128xf32>
    %c9 = arith.constant 9 : index
    %29 = memref.load %arg1[%c9] : memref<26xf32, #tpu.memory_space<smem>>
    %30 = vector.broadcast %29 : f32 to vector<1x128xf32>
    %31 = arith.mulf %30, %3 : vector<1x128xf32>
    %32 = arith.addf %28, %31 : vector<1x128xf32>
    %33 = math.tanh %32 : vector<1x128xf32>
    %c14 = arith.constant 14 : index
    %34 = memref.load %arg1[%c14] : memref<26xf32, #tpu.memory_space<smem>>
    %c2 = arith.constant 2 : index
    %35 = memref.load %arg1[%c2] : memref<26xf32, #tpu.memory_space<smem>>
    %36 = vector.broadcast %35 : f32 to vector<1x128xf32>
    %37 = arith.mulf %36, %1 : vector<1x128xf32>
    %38 = vector.broadcast %34 : f32 to vector<1x128xf32>
    %39 = arith.addf %38, %37 : vector<1x128xf32>
    %c6 = arith.constant 6 : index
    %40 = memref.load %arg1[%c6] : memref<26xf32, #tpu.memory_space<smem>>
    %41 = vector.broadcast %40 : f32 to vector<1x128xf32>
    %42 = arith.mulf %41, %2 : vector<1x128xf32>
    %43 = arith.addf %39, %42 : vector<1x128xf32>
    %c10 = arith.constant 10 : index
    %44 = memref.load %arg1[%c10] : memref<26xf32, #tpu.memory_space<smem>>
    %45 = vector.broadcast %44 : f32 to vector<1x128xf32>
    %46 = arith.mulf %45, %3 : vector<1x128xf32>
    %47 = arith.addf %43, %46 : vector<1x128xf32>
    %48 = math.tanh %47 : vector<1x128xf32>
    %c15 = arith.constant 15 : index
    %49 = memref.load %arg1[%c15] : memref<26xf32, #tpu.memory_space<smem>>
    %c3 = arith.constant 3 : index
    %50 = memref.load %arg1[%c3] : memref<26xf32, #tpu.memory_space<smem>>
    %51 = vector.broadcast %50 : f32 to vector<1x128xf32>
    %52 = arith.mulf %51, %1 : vector<1x128xf32>
    %53 = vector.broadcast %49 : f32 to vector<1x128xf32>
    %54 = arith.addf %53, %52 : vector<1x128xf32>
    %c7 = arith.constant 7 : index
    %55 = memref.load %arg1[%c7] : memref<26xf32, #tpu.memory_space<smem>>
    %56 = vector.broadcast %55 : f32 to vector<1x128xf32>
    %57 = arith.mulf %56, %2 : vector<1x128xf32>
    %58 = arith.addf %54, %57 : vector<1x128xf32>
    %c11 = arith.constant 11 : index
    %59 = memref.load %arg1[%c11] : memref<26xf32, #tpu.memory_space<smem>>
    %60 = vector.broadcast %59 : f32 to vector<1x128xf32>
    %61 = arith.mulf %60, %3 : vector<1x128xf32>
    %62 = arith.addf %58, %61 : vector<1x128xf32>
    %63 = math.tanh %62 : vector<1x128xf32>
    %c24 = arith.constant 24 : index
    %64 = memref.load %arg1[%c24] : memref<26xf32, #tpu.memory_space<smem>>
    %c16 = arith.constant 16 : index
    %65 = memref.load %arg1[%c16] : memref<26xf32, #tpu.memory_space<smem>>
    %66 = vector.broadcast %65 : f32 to vector<1x128xf32>
    %67 = arith.mulf %66, %18 : vector<1x128xf32>
    %68 = vector.broadcast %64 : f32 to vector<1x128xf32>
    %69 = arith.addf %68, %67 : vector<1x128xf32>
    %c18 = arith.constant 18 : index
    %70 = memref.load %arg1[%c18] : memref<26xf32, #tpu.memory_space<smem>>
    %71 = vector.broadcast %70 : f32 to vector<1x128xf32>
    %72 = arith.mulf %71, %33 : vector<1x128xf32>
    %73 = arith.addf %69, %72 : vector<1x128xf32>
    %c20 = arith.constant 20 : index
    %74 = memref.load %arg1[%c20] : memref<26xf32, #tpu.memory_space<smem>>
    %75 = vector.broadcast %74 : f32 to vector<1x128xf32>
    %76 = arith.mulf %75, %48 : vector<1x128xf32>
    %77 = arith.addf %73, %76 : vector<1x128xf32>
    %c22 = arith.constant 22 : index
    %78 = memref.load %arg1[%c22] : memref<26xf32, #tpu.memory_space<smem>>
    %79 = vector.broadcast %78 : f32 to vector<1x128xf32>
    %80 = arith.mulf %79, %63 : vector<1x128xf32>
    %81 = arith.addf %77, %80 : vector<1x128xf32>
    %c0_2 = arith.constant 0 : index
    %c0_3 = arith.constant 0 : index
    %82 = vector.load %arg3[%c0_2, %c0_3] : memref<2x128xf32, #tpu.memory_space<vmem>>, vector<1x128xf32>
    tpu.vector_store %arg3[%c0_2, %c0_3], %81 {strides = array<i32>} : memref<2x128xf32, #tpu.memory_space<vmem>>, vector<1x128xf32>,
    %c25 = arith.constant 25 : index
    %83 = memref.load %arg1[%c25] : memref<26xf32, #tpu.memory_space<smem>>
    %c17 = arith.constant 17 : index
    %84 = memref.load %arg1[%c17] : memref<26xf32, #tpu.memory_space<smem>>
    %85 = vector.broadcast %84 : f32 to vector<1x128xf32>
    %86 = arith.mulf %85, %18 : vector<1x128xf32>
    %87 = vector.broadcast %83 : f32 to vector<1x128xf32>
    %88 = arith.addf %87, %86 : vector<1x128xf32>
    %c19 = arith.constant 19 : index
    %89 = memref.load %arg1[%c19] : memref<26xf32, #tpu.memory_space<smem>>
    %90 = vector.broadcast %89 : f32 to vector<1x128xf32>
    %91 = arith.mulf %90, %33 : vector<1x128xf32>
    %92 = arith.addf %88, %91 : vector<1x128xf32>
    %c21 = arith.constant 21 : index
    %93 = memref.load %arg1[%c21] : memref<26xf32, #tpu.memory_space<smem>>
    %94 = vector.broadcast %93 : f32 to vector<1x128xf32>
    %95 = arith.mulf %94, %48 : vector<1x128xf32>
    %96 = arith.addf %92, %95 : vector<1x128xf32>
    %c23 = arith.constant 23 : index
    %97 = memref.load %arg1[%c23] : memref<26xf32, #tpu.memory_space<smem>>
    %98 = vector.broadcast %97 : f32 to vector<1x128xf32>
    %99 = arith.mulf %98, %63 : vector<1x128xf32>
    %100 = arith.addf %96, %99 : vector<1x128xf32>
    %c1_4 = arith.constant 1 : index
    %c0_5 = arith.constant 0 : index
    %101 = vector.load %arg3[%c1_4, %c0_5] : memref<2x128xf32, #tpu.memory_space<vmem>>, vector<1x128xf32>
    tpu.vector_store %arg3[%c1_4, %c0_5], %100 {strides = array<i32>} : memref<2x128xf32, #tpu.memory_space<vmem>>, vector<1x128xf32>,
    return
  }
  func.func @transform_0(%arg0: i32) -> i32 {
    %c0_i32 = arith.constant 0 : i32
    %c0_i32_0 = arith.constant 0 : i32
    return %c0_i32 : i32
  }
  func.func @transform_1(%arg0: i32) -> (i32, i32) {
    %c0_i32 = arith.constant 0 : i32
    %c0_i32_0 = arith.constant 0 : i32
    return %c0_i32, %arg0 : i32, i32
  }
  func.func @transform_2(%arg0: i32) -> (i32, i32) {
    %c0_i32 = arith.constant 0 : i32
    %c0_i32_0 = arith.constant 0 : i32
    return %c0_i32, %arg0 : i32, i32
  }
}

</mosaic_0001>

<llo_original>
// kernel: model3_1_forward.1
$region0: #{model3_1_forward.1}
  #allocation0 [shape = 'u32[]', space=smem, size = 0x4, offset = 0x4, fixed_abs, tag = 'smem constant byte address 0x4 - core index']
  #allocation1 [shape = 'u32[144,128]{1,0:T(1,128)}', space=vmem, size = 0x12000, scoped, tag = 'internal scratch']
  %s0 = inlined_call_operand.vmem [shape: f32[26], index: 0, kind: input, shape index: {}]
  %s1 = inlined_call_operand.vmem [shape: f32[3,128], index: 1, kind: input, shape index: {}]
  %s2 = inlined_call_operand.vmem [shape: f32[2,128], index: 2, kind: output, shape index: {}]
  %s3 = sld [smem:[#allocation0]]
  $region22: #{model3_1_forward.1} parent=0
    _
  %s5 = ssub.s32 1, %s3
  %s6 = scalar_select 0, %s5, %s3
  $region1: #{model3_1_forward.1} parent=0
    #allocation2 [shape = 'u8[512]{0}', space=smem, size = 0x200, scoped, tag = 'input window, operand 0, single buffered']
    #allocation3 [shape = 's32[1]{0}', space=sflag, size = 0x4, scoped, tag = 'scoped memory for model3_1_forward.1']
    %7 = vsyncpa [#allocation3], 0
    // Predicated region
    $region2: #{model3_1_forward.1} parent=1 // pred_check
      _
    $region3: #{model3_1_forward.1} parent=1 // pred_check_branch
      %9 = sbr.rel (0) target = $region5
    $region4: #{model3_1_forward.1} parent=1 // pred_region
      %s11 = ssub.s32 16, 16
      %12 = vsyncadd [#allocation3], %s11
      %s14 = sshll.u32 %s0, 4
      %s15 = int_to_ptr.vmem [resolvable:$true] %s14
      %17 = dma.vmem_to_smem %s15, 16, [#allocation2], [#allocation3]
    $region5: #{model3_1_forward.1} parent=1 // pred_fallthru
      _
    // Predicated region
    $region6: #{model3_1_forward.1} parent=1 // pred_check
      _
    $region7: #{model3_1_forward.1} parent=1 // pred_check_branch
      %19 = sbr.rel (0) target = $region9
    $region8: #{model3_1_forward.1} parent=1 // pred_region
      _
    $region9: #{model3_1_forward.1} parent=1 // pred_fallthru
      _
    // Predicated region
    $region10: #{model3_1_forward.1} parent=1 // pred_check
      _
    $region11: #{model3_1_forward.1} parent=1 // pred_check_branch
      %21 = sbr.rel (0) target = $region13
    $region12: #{model3_1_forward.1} parent=1 // pred_region
      %22 = dma.done [#allocation3], 16
    $region13: #{model3_1_forward.1} parent=1 // pred_fallthru
      _
    %23 = sfence
    %v24 = vld [vmem:[%s1] sm:$0x7]
    %s25 = sld [smem:[#allocation2 + $0xc]]
    %s26 = sld [smem:[#allocation2]]
    %v27 = vstv %s26
    %v28 = vmul.f32 %v27, %v24
    %v29 = vstv %s25
    %v30 = vadd.f32 %v29, %v28
    %s31 = sld [smem:[#allocation2 + $0x4]]
    %v32 = vstv %s31
    %v33 = vmul.f32 %v32, %v24
    %v35 = vrot.slane %v33, 1
    %v37 = vadd.f32 %v30, %v35
    %s38 = sld [smem:[#allocation2 + $0x8]]
    %v39 = vstv %s38
    %v40 = vmul.f32 %v39, %v24
    %v42 = vrot.slane %v40, 2
    %v44 = vadd.f32 %v37, %v42
    %v45 = vtanh.pop %v44
    %s46 = sld [smem:[#allocation2 + $0xd]]
    %s47 = sld [smem:[#allocation2 + $0x1]]
    %v48 = vstv %s47
    %v49 = vmul.f32 %v48, %v24
    %v50 = vstv %s46
    %v51 = vadd.f32 %v50, %v49
    %s52 = sld [smem:[#allocation2 + $0x5]]
    %v53 = vstv %s52
    %v54 = vmul.f32 %v53, %v24
    %v56 = vrot.slane %v54, 1
    %v58 = vadd.f32 %v51, %v56
    %s59 = sld [smem:[#allocation2 + $0x9]]
    %v60 = vstv %s59
    %v61 = vmul.f32 %v60, %v24
    %v63 = vrot.slane %v61, 2
    %v65 = vadd.f32 %v58, %v63
    %v66 = vtanh.pop %v65
    %s67 = sld [smem:[#allocation2 + $0xe]]
    %s68 = sld [smem:[#allocation2 + $0x2]]
    %v69 = vstv %s68
    %v70 = vmul.f32 %v69, %v24
    %v71 = vstv %s67
    %v72 = vadd.f32 %v71, %v70
    %s73 = sld [smem:[#allocation2 + $0x6]]
    %v74 = vstv %s73
    %v75 = vmul.f32 %v74, %v24
    %v77 = vrot.slane %v75, 1
    %v79 = vadd.f32 %v72, %v77
    %s80 = sld [smem:[#allocation2 + $0xa]]
    %v81 = vstv %s80
    %v82 = vmul.f32 %v81, %v24
    %v84 = vrot.slane %v82, 2
    %v86 = vadd.f32 %v79, %v84
    %v87 = vtanh.pop %v86
    %s88 = sld [smem:[#allocation2 + $0xf]]
    %s89 = sld [smem:[#allocation2 + $0x3]]
    %v90 = vstv %s89
    %v91 = vmul.f32 %v90, %v24
    %v92 = vstv %s88
    %v93 = vadd.f32 %v92, %v91
    %s94 = sld [smem:[#allocation2 + $0x7]]
    %v95 = vstv %s94
    %v96 = vmul.f32 %v95, %v24
    %v98 = vrot.slane %v96, 1
    %v100 = vadd.f32 %v93, %v98
    %s101 = sld [smem:[#allocation2 + $0xb]]
    %v102 = vstv %s101
    %v103 = vmul.f32 %v102, %v24
    %v105 = vrot.slane %v103, 2
    %v107 = vadd.f32 %v100, %v105
    %v108 = vtanh.pop %v107
    %s109 = sld [smem:[#allocation2 + $0x18]]
    %s110 = sld [smem:[#allocation2 + $0x10]]
    %v111 = vstv %s110
    %v112 = vmul.f32 %v111, %v45
    %v113 = vstv %s109
    %v114 = vadd.f32 %v113, %v112
    %s115 = sld [smem:[#allocation2 + $0x12]]
    %v116 = vstv %s115
    %v117 = vmul.f32 %v116, %v66
    %v118 = vadd.f32 %v114, %v117
    %s119 = sld [smem:[#allocation2 + $0x14]]
    %v120 = vstv %s119
    %v121 = vmul.f32 %v120, %v87
    %v122 = vadd.f32 %v118, %v121
    %s123 = sld [smem:[#allocation2 + $0x16]]
    %v124 = vstv %s123
    %v125 = vmul.f32 %v124, %v108
    %v126 = vadd.f32 %v122, %v125
    %127 = vst [vmem:[%s2] sm:$0x1] %v126
    %s128 = sld [smem:[#allocation2 + $0x19]]
    %s129 = sld [smem:[#allocation2 + $0x11]]
    %v130 = vstv %s129
    %v131 = vmul.f32 %v130, %v45
    %v132 = vstv %s128
    %v133 = vadd.f32 %v132, %v131
    %s134 = sld [smem:[#allocation2 + $0x13]]
    %v135 = vstv %s134
    %v136 = vmul.f32 %v135, %v66
    %v137 = vadd.f32 %v133, %v136
    %s138 = sld [smem:[#allocation2 + $0x15]]
    %v139 = vstv %s138
    %v140 = vmul.f32 %v139, %v87
    %v141 = vadd.f32 %v137, %v140
    %s142 = sld [smem:[#allocation2 + $0x17]]
    %v143 = vstv %s142
    %v144 = vmul.f32 %v143, %v108
    %v145 = vadd.f32 %v141, %v144
    %146 = vst [vmem:[%s2 + $0x1] sm:$0x1] %v145
    // Predicated region
    $region14: #{model3_1_forward.1} parent=1 // pred_check
      _
    $region15: #{model3_1_forward.1} parent=1 // pred_check_branch
      %148 = sbr.rel (0) target = $region17
    $region16: #{model3_1_forward.1} parent=1 // pred_region
      _
    $region17: #{model3_1_forward.1} parent=1 // pred_fallthru
      _
    // Predicated region
    $region18: #{model3_1_forward.1} parent=1 // pred_check
      _
    $region19: #{model3_1_forward.1} parent=1 // pred_check_branch
      %150 = sbr.rel (0) target = $region21
    $region20: #{model3_1_forward.1} parent=1 // pred_region
      _
    $region21: #{model3_1_forward.1} parent=1 // pred_fallthru
      _
    %151 = vsyncpa [#allocation3], 1

</llo_original>
